<compile_context>
chip_gen: v7x
topology: tpu7x:2x2x1
jax: 0.10.0
libtpu: 0.0.40
codegen_flags: <defaults>
</compile_context>

<pallas_src>
import functools
import math

import jax
import jax.numpy as jnp
from jax.experimental import pallas as pl
from jax.experimental.pallas import tpu as pltpu

_LANE = 128
_SUBLANE = 8
_TARGET_BLOCK_BYTES = 4 * 1024 * 1024  # ~4 MiB of input per block (2-8 MiB sweet spot)


def _round_up(x, m):
    return ((x + m - 1) // m) * m


def _vmem_capacity_bytes():
    try:
        return int(pltpu.get_tpu_info().vmem_capacity_bytes)
    except Exception:
        return 64 * 1024 * 1024  # conservative fallback (v7x per-TC VMEM)


# --------------------------------------------------------------------------
# Kernels
# --------------------------------------------------------------------------
def _softmax_lastdim_kernel(x_ref, o_ref):
    # Numerically-stable softmax over the last axis of a (tile_rows, cols) block.
    x = x_ref[...].astype(jnp.float32)
    m = jnp.max(x, axis=-1, keepdims=True)
    e = jnp.exp(x - m)
    s = jnp.sum(e, axis=-1, keepdims=True)
    # Exact division: HBM-bound kernel, per-row divide -> exact is free accuracy.
    o_ref[...] = (e / s).astype(o_ref.dtype)


def _softmax_middim_kernel(x_ref, o_ref):
    # Block shape (1, R, tile_c); softmax over axis 1 (sublane-axis reduction,
    # goes to the XLU which has slack in this mem-bound kernel).
    x = x_ref[...].astype(jnp.float32)
    m = jnp.max(x, axis=1, keepdims=True)
    e = jnp.exp(x - m)
    s = jnp.sum(e, axis=1, keepdims=True)
    o_ref[...] = (e / s).astype(o_ref.dtype)


# --------------------------------------------------------------------------
# Tiling heuristics
# --------------------------------------------------------------------------
def _pick_row_tiling(rows, cols, itemsize):
    """Tile rows for the last-axis kernel: (tile_rows, vmem_limit_bytes)."""
    vmem_cap = _vmem_capacity_bytes()
    budget = vmem_cap // 4  # leave pipelining / co-scheduled-fusion headroom
    # in + out double-buffered in the I/O dtype, plus f32 temporaries
    # (when I/O is already f32 the upcast is a no-op -> fewer temps).
    n_f32_temps = 2 if itemsize == 4 else 3
    per_row = cols * (4 * itemsize + n_f32_temps * 4)
    rows_up = _round_up(rows, _SUBLANE)

    if _SUBLANE * per_row > budget:
        # TODO(synk): very wide rows (cols*f32 approaching v7x's 64 MiB VMEM)
        # need an online, column-chunked softmax with running max/sum; not
        # implemented — fall back to the minimum 8-row tile.
        tile_rows = _SUBLANE
    else:
        target_rows = max(_TARGET_BLOCK_BYTES // max(cols * itemsize, 1), _SUBLANE)
        tile_rows = min(budget // per_row, target_rows)
        tile_rows = max(_SUBLANE, (tile_rows // _SUBLANE) * _SUBLANE)
        tile_rows = min(tile_rows, rows_up)
        # v7x: keep >= 2 row tiles so both TensorCores contribute HBM bandwidth
        # (costs one ~0.35us grid step on single-TC chips — negligible).
        if rows_up // tile_rows < 2 and rows_up >= 2 * _SUBLANE:
            tile_rows = _round_up(pl.cdiv(rows_up, 2), _SUBLANE)

    needed = tile_rows * per_row
    vmem_limit = int(min(vmem_cap * 3 // 4, max(needed + (8 << 20), 32 << 20)))
    return int(tile_rows), vmem_limit


def _pick_col_tiling(R, C, itemsize):
    """Tile columns for the middle-axis kernel: (tile_c, vmem_limit_bytes)."""
    vmem_cap = _vmem_capacity_bytes()
    budget = vmem_cap // 4
    n_f32_temps = 2 if itemsize == 4 else 3
    per_col = R * (4 * itemsize + n_f32_temps * 4)

    if C <= _LANE:
        tile_c = C  # full last dim -> legal block even when C < 128
    else:
        c_up = _round_up(C, _LANE)
        target_c = max(_TARGET_BLOCK_BYTES // max(R * itemsize, 1), _LANE)
        tile_c = min(budget // max(per_col, 1), target_c)
        tile_c = max(_LANE, (tile_c // _LANE) * _LANE)
        tile_c = min(tile_c, c_up)
        # TODO(synk): if even a 128-lane-wide column block over full R exceeds
        # the VMEM budget, an online softmax chunked over R would be needed.

    needed = tile_c * per_col
    vmem_limit = int(min(vmem_cap * 3 // 4, max(needed + (8 << 20), 32 << 20)))
    return int(tile_c), vmem_limit


# --------------------------------------------------------------------------
# pallas_call wrappers
# --------------------------------------------------------------------------
@functools.partial(jax.jit, static_argnames=("tile_rows", "vmem_limit_bytes"))
def _softmax_lastdim_2d(x2d, *, tile_rows, vmem_limit_bytes):
    rows, cols = x2d.shape
    return pl.pallas_call(
        _softmax_lastdim_kernel,
        out_shape=jax.ShapeDtypeStruct((rows, cols), x2d.dtype),
        grid_spec=pltpu.PrefetchScalarGridSpec(
            num_scalar_prefetch=0,
            grid=(pl.cdiv(rows, tile_rows),),
            in_specs=[pl.BlockSpec((tile_rows, cols), lambda i: (i, 0))],
            out_specs=pl.BlockSpec((tile_rows, cols), lambda i: (i, 0)),
        ),
        compiler_params=pltpu.CompilerParams(
            dimension_semantics=("parallel",),  # v7x shards row tiles across TCs
            vmem_limit_bytes=vmem_limit_bytes,
        ),
    )(x2d)


@functools.partial(jax.jit, static_argnames=("tile_c", "vmem_limit_bytes"))
def _softmax_middim_3d(x3d, *, tile_c, vmem_limit_bytes):
    B, R, C = x3d.shape
    return pl.pallas_call(
        _softmax_middim_kernel,
        out_shape=jax.ShapeDtypeStruct((B, R, C), x3d.dtype),
        grid_spec=pltpu.PrefetchScalarGridSpec(
            num_scalar_prefetch=0,
            grid=(B, pl.cdiv(C, tile_c)),
            in_specs=[pl.BlockSpec((1, R, tile_c), lambda b, c: (b, 0, c))],
            out_specs=pl.BlockSpec((1, R, tile_c), lambda b, c: (b, 0, c)),
        ),
        compiler_params=pltpu.CompilerParams(
            dimension_semantics=("parallel", "parallel"),
            vmem_limit_bytes=vmem_limit_bytes,
        ),
    )(x3d)


# --------------------------------------------------------------------------
# Public API (matches the PyTorch Softmax helper module forward)
# --------------------------------------------------------------------------
def softmax(x, dim=None, invAttnHead=None):
    """Pallas equivalent of torch.softmax(x, dim)."""
    del invAttnHead  # unused; kept for signature parity with the PyTorch module
    x = jnp.asarray(x)
    if x.ndim == 0:
        return jnp.ones_like(x)
    if dim is None:
        # mimic torch's _get_softmax_dim behaviour
        dim = 0 if x.ndim in (0, 1, 3) else 1
    dim = dim % x.ndim

    shape = x.shape
    trailing = math.prod(shape[dim + 1:]) if dim + 1 < x.ndim else 1

    if dim == x.ndim - 1 or trailing == 1:
        # Last-axis softmax (or everything after `dim` is size-1, which is the
        # same thing after a free contiguous reshape).
        rows = math.prod(shape[:dim]) if dim > 0 else 1
        cols = shape[dim]
        x2d = x.reshape(rows, cols)
        tile_rows, vmem_limit = _pick_row_tiling(rows, cols, x2d.dtype.itemsize)
        y2d = _softmax_lastdim_2d(x2d, tile_rows=tile_rows,
                                  vmem_limit_bytes=vmem_limit)
        return y2d.reshape(shape)

    # Middle-axis softmax: contiguous reshape to (B, R, C) and reduce axis 1
    # inside the kernel — avoids the moveaxis transpose round-trip (2 extra
    # HBM passes) of the previous version.
    B = math.prod(shape[:dim]) if dim > 0 else 1
    R = shape[dim]
    C = trailing
    x3d = x.reshape(B, R, C)
    tile_c, vmem_limit = _pick_col_tiling(R, C, x3d.dtype.itemsize)
    y3d = _softmax_middim_3d(x3d, tile_c=tile_c, vmem_limit_bytes=vmem_limit)
    return y3d.reshape(shape)


if __name__ == "__main__":
    key = jax.random.PRNGKey(0)
    k1, _, k3 = jax.random.split(key, 3)

    # Attention-score-like input: (batch, heads, q_len, k_len)
    x1 = jax.random.normal(k1, (2, 4, 16, 32), dtype=jnp.float32)
    out1 = softmax(x1, dim=-1)
    jax.block_until_ready(out1)
    ref1 = jax.nn.softmax(x1, axis=-1)
    assert out1.shape == x1.shape and out1.dtype == x1.dtype
    assert jnp.allclose(out1, ref1, atol=1e-4, rtol=1e-4)

    # Non-last-dim softmax (exercises the middle-axis kernel, no transpose).
    out2 = softmax(x1, dim=1)
    jax.block_until_ready(out2)
    ref2 = jax.nn.softmax(x1, axis=1)
    assert jnp.allclose(out2, ref2, atol=1e-4, rtol=1e-4)

    # bf16 input with awkward shape (row overhang, cols < 128, no padding).
    x3 = jax.random.normal(k3, (3, 5, 7), dtype=jnp.bfloat16)
    out3 = softmax(x3, dim=-1)
    jax.block_until_ready(out3)
    ref3 = jax.nn.softmax(x3.astype(jnp.float32), axis=-1).astype(jnp.bfloat16)
    assert out3.shape == x3.shape and out3.dtype == x3.dtype
    assert jnp.allclose(out3.astype(jnp.float32), ref3.astype(jnp.float32),
                        atol=2e-2, rtol=2e-2)

    # Leading-dim softmax on the same bf16 tensor (middle-axis kernel, C < 128).
    out4 = softmax(x3, dim=0)
    jax.block_until_ready(out4)
    ref4 = jax.nn.softmax(x3.astype(jnp.float32), axis=0).astype(jnp.bfloat16)
    assert jnp.allclose(out4.astype(jnp.float32), ref4.astype(jnp.float32),
                        atol=2e-2, rtol=2e-2)

    print("KERNEL_OK")
</pallas_src>

<mosaic_0001>
module attributes {stable_mosaic.version = 11 : i64} {
  func.func @_softmax_lastdim_kernel(%arg0: i32, %arg1: memref<64x32xf32, #tpu.memory_space<vmem>>, %arg2: memref<64x32xf32, #tpu.memory_space<vmem>>) attributes {dimension_semantics = [#tpu.dimension_semantics<parallel>], iteration_bounds = array<i64: 2>, scalar_prefetch = 0 : i64, scratch_operands = 0 : i64, tpu.core_type = #tpu.core_type<tc>, window_params = [{transform_indices = @transform_0, window_bounds = array<i64: 64, 32>}, {transform_indices = @transform_1, window_bounds = array<i64: 64, 32>}]} {
    %c0 = arith.constant 0 : index
    %c0_0 = arith.constant 0 : index
    %0 = vector.load %arg1[%c0, %c0_0] : memref<64x32xf32, #tpu.memory_space<vmem>>, vector<64x32xf32>
    %cst = arith.constant dense<0xFF800000> : vector<64xf32>
    %1 = vector.multi_reduction <maximumf>, %0, %cst [1] : vector<64x32xf32> to vector<64xf32>
    %2 = vector.shape_cast %1 : vector<64xf32> to vector<64x1xf32>
    %3 = vector.broadcast %2 : vector<64x1xf32> to vector<64x32xf32>
    %4 = arith.subf %0, %3 : vector<64x32xf32>
    %5 = math.exp %4 : vector<64x32xf32>
    %cst_1 = arith.constant dense<0.000000e+00> : vector<64xf32>
    %6 = vector.multi_reduction <add>, %5, %cst_1 [1] : vector<64x32xf32> to vector<64xf32>
    %7 = vector.shape_cast %6 : vector<64xf32> to vector<64x1xf32>
    %8 = vector.broadcast %7 : vector<64x1xf32> to vector<64x32xf32>
    %9 = arith.divf %5, %8 : vector<64x32xf32>
    %c0_2 = arith.constant 0 : index
    %c0_3 = arith.constant 0 : index
    %10 = vector.load %arg2[%c0_2, %c0_3] : memref<64x32xf32, #tpu.memory_space<vmem>>, vector<64x32xf32>
    tpu.vector_store %arg2[%c0_2, %c0_3], %9 {strides = array<i32>} : memref<64x32xf32, #tpu.memory_space<vmem>>, vector<64x32xf32>,
    return
  }
  func.func @transform_0(%arg0: i32) -> (i32, i32) {
    %c0_i32 = arith.constant 0 : i32
    %c0_i32_0 = arith.constant 0 : i32
    return %arg0, %c0_i32 : i32, i32
  }
  func.func @transform_1(%arg0: i32) -> (i32, i32) {
    %c0_i32 = arith.constant 0 : i32
    %c0_i32_0 = arith.constant 0 : i32
    return %arg0, %c0_i32 : i32, i32
  }
}

</mosaic_0001>

<llo_original>
// kernel: _softmax_lastdim_2d.1
$region0: #{_softmax_lastdim_2d.1}
  #allocation0 [shape = 'u32[]', space=smem, size = 0x4, offset = 0x4, fixed_abs, tag = 'smem constant byte address 0x4 - core index']
  #allocation1 [shape = 'u32[144,128]{1,0:T(1,128)}', space=vmem, size = 0x12000, scoped, tag = 'internal scratch']
  %s0 = inlined_call_operand.vmem [shape: f32[128,32], index: 0, kind: input, shape index: {}]
  %s1 = inlined_call_operand.vmem [shape: f32[128,32], index: 1, kind: output, shape index: {}]
  %s2 = sld [smem:[#allocation0]]
  $region37: #{_softmax_lastdim_2d.1} parent=0
    _
  %s4 = ssub.s32 1, %s2
  %s5 = scalar_select 0, %s4, %s2
  loop: start=0, step=1, limit=4
  $region2: #{_softmax_lastdim_2d.1} parent=0 // loop_pre_header
    _
  $region3: #{_softmax_lastdim_2d.1} parent=0 // loop_header
    %s7 = sphi 0, %s11
    %p8 = scmp.ge.s32.totalorder %s7, 4
    %s17 = sphi 0, %s19
    %s20 = sphi 0, %s17
    %s21 = sphi 0, %s20
    %s37 = sphi 0, %s21
    %s43 = sphi 0, %s45
    %s46 = sphi 0, %s43
    %s47 = sphi 0, %s46
    %s63 = sphi 0, %s47
  $region4: #{_softmax_lastdim_2d.1} parent=0 // loop_header_branch
    %10 = sbr.rel (%p8) target = $region8
  $region5: #{_softmax_lastdim_2d.1} parent=0 // loop_body
    %s12 = ssub.s32 %s7, 1
    %s13 = ssub.s32 %s7, 2
    %s14 = sadd.s32 %s7, 1
    %s15 = ssub.s32 %s7, %s14
    %p16 = scmp.eq.s32.totalorder %s15, 0
    %s18 = sadd.s32 %s17, 1
    %s19 = scalar_select %p16, %s17, %s18
    %p22 = pneg %p16
    %p23 = scmp.eq.s32.totalorder %s7, 1
    %p24 = por %p22, %p23
    %p25 = scmp.ne.s32.totalorder %s17, %s20
    %p26 = scmp.eq.s32.totalorder %s7, 0
    %p27 = por %p25, %p26
    %p28 = scmp.ne.s32.totalorder %s17, %s20
    %p29 = scmp.eq.s32.totalorder %s12, 1
    %p30 = por %p28, %p29
    %p31 = scmp.ne.s32.totalorder %s20, %s21
    %p32 = scmp.eq.s32.totalorder %s12, 0
    %p33 = por %p31, %p32
    %p34 = scmp.ne.s32.totalorder %s20, %s21
    %p35 = scmp.eq.s32.totalorder %s13, 1
    %p36 = por %p34, %p35
    %p38 = scmp.ne.s32.totalorder %s21, %s37
    %p39 = scmp.eq.s32.totalorder %s13, 0
    %p40 = por %p38, %p39
    %s41 = ssub.s32 %s7, %s14
    %p42 = scmp.eq.s32.totalorder %s41, 0
    %s44 = sadd.s32 %s43, 1
    %s45 = scalar_select %p42, %s43, %s44
    %p48 = pneg %p42
    %p49 = scmp.eq.s32.totalorder %s7, 1
    %p50 = por %p48, %p49
    %p51 = scmp.ne.s32.totalorder %s43, %s46
    %p52 = scmp.eq.s32.totalorder %s7, 0
    %p53 = por %p51, %p52
    %p54 = scmp.ne.s32.totalorder %s43, %s46
    %p55 = scmp.eq.s32.totalorder %s12, 1
    %p56 = por %p54, %p55
    %p57 = scmp.ne.s32.totalorder %s46, %s47
    %p58 = scmp.eq.s32.totalorder %s12, 0
    %p59 = por %p57, %p58
    %p60 = scmp.ne.s32.totalorder %s46, %s47
    %p61 = scmp.eq.s32.totalorder %s13, 1
    %p62 = por %p60, %p61
    %p64 = scmp.ne.s32.totalorder %s47, %s63
    %p65 = scmp.eq.s32.totalorder %s13, 0
    %p66 = por %p64, %p65
    %p67 = scmp.le.s32.totalorder 1, %s7
    %p68 = scmp.lt.s32.totalorder %s7, 3
    %p69 = pnand %p67, %p68
    %p70 = pneg %p69
    // Predicated region
    $region9: #{_softmax_lastdim_2d.1} parent=5 // pred_check
      _
    $region10: #{_softmax_lastdim_2d.1} parent=5 // pred_check_branch
      %72 = sbr.rel (%p69) target = $region12
    $region11: #{_softmax_lastdim_2d.1} parent=5 // pred_region
      %s73 = ssub.s32 %s7, 1
    $region12: #{_softmax_lastdim_2d.1} parent=5 // pred_fallthru
      _
    %p74 = scmp.lt.s32.totalorder %s7, 2
    // Predicated region
    $region13: #{_softmax_lastdim_2d.1} parent=5 // pred_check
      %p75 = pneg %p74
    $region14: #{_softmax_lastdim_2d.1} parent=5 // pred_check_branch
      %77 = sbr.rel (%p75) target = $region16
    $region15: #{_softmax_lastdim_2d.1} parent=5 // pred_region
      // Predicated region
      $region17: #{_softmax_lastdim_2d.1} parent=15 // pred_check
        %p78 = pneg %p27
      $region18: #{_softmax_lastdim_2d.1} parent=15 // pred_check_branch
        %80 = sbr.rel (%p78) target = $region20
      $region19: #{_softmax_lastdim_2d.1} parent=15 // pred_region
        %s81 = smul.u32 8, %s7
        %p82 = scmp.lt.s32.totalorder %s81, 15
        %s83 = scalar_select %p82, %s81, 15
        %s84 = smul.addr %s83, 8
        %s85 = scalar_lea.vmem %s0, %s84
        %s86 = smul.u32 8, %s7
      $region20: #{_softmax_lastdim_2d.1} parent=15 // pred_fallthru
        _
    $region16: #{_softmax_lastdim_2d.1} parent=5 // pred_fallthru
      _
    %p87 = scmp.le.s32.totalorder 1, %s7
    %p88 = scmp.lt.s32.totalorder %s7, 3
    %p89 = pnand %p87, %p88
    %p90 = pneg %p89
    // Predicated region
    $region21: #{_softmax_lastdim_2d.1} parent=5 // pred_check
      _
    $region22: #{_softmax_lastdim_2d.1} parent=5 // pred_check_branch
      %92 = sbr.rel (%p89) target = $region24
    $region23: #{_softmax_lastdim_2d.1} parent=5 // pred_region
      %s93 = ssub.s32 %s7, 1
      %s94 = smul.u32 8, %s12
      %p95 = scmp.lt.s32.totalorder %s94, 15
      %s96 = scalar_select %p95, %s94, 15
      %s97 = smul.addr %s96, 8
      %s98 = scalar_lea.vmem %s0, %s97
      %p99 = pneg %p33
      %p100 = pneg %p30
      %p101 = pneg %p59
      %p102 = pneg %p56
      %s103 = smul.u32 8, %s12
      %p104 = scmp.lt.s32.totalorder %s103, 15
      %s105 = scalar_select %p104, %s103, 15
      %s106 = smul.addr %s105, 8
      %s107 = scalar_lea.vmem %s1, %s106
      %s108 = smul.u32 8, %s12
      %p109 = scmp.lt.s32.totalorder %s108, 15
      %s110 = scalar_select %p109, %s108, 15
      %s111 = smul.addr %s110, 8
      %s112 = scalar_lea.vmem %s0, %s111
      %s113 = smul.u32 8, %s12
      %s114 = smul.u32 8, %s12
      %p115 = scmp.lt.s32.totalorder %s114, 15
      %s116 = scalar_select %p115, %s114, 15
      %s117 = smul.addr %s116, 8
      %s118 = scalar_lea.vmem %s1, %s117
      %s119 = smul.u32 8, %s12
      %v120 = vld [vmem:[%s112] sm:$0xff]
      %v121 = vld [vmem:[%s112 + $0x8] sm:$0xff]
      %v122 = vld [vmem:[%s112 + $0x10] sm:$0xff]
      %v123 = vld [vmem:[%s112 + $0x18] sm:$0xff]
      %v124 = vld [vmem:[%s112 + $0x20] sm:$0xff]
      %v125 = vld [vmem:[%s112 + $0x28] sm:$0xff]
      %v126 = vld [vmem:[%s112 + $0x30] sm:$0xff]
      %v127 = vld [vmem:[%s112 + $0x38] sm:$0xff]
      %vm128 = vcmask 261120
      %v129 = vsel %vm128, %v120, -inf
      %130 = vmax.xlane.f32.xlu0 %v129
      %v131 = vpop.xlane.xlu0 %130
      %v132 = vsel %vm128, %v121, -inf
      %133 = vmax.xlane.f32.xlu0 %v132
      %v134 = vpop.xlane.xlu0 %133
      %v135 = vsel %vm128, %v122, -inf
      %136 = vmax.xlane.f32.xlu0 %v135
      %v137 = vpop.xlane.xlu0 %136
      %v138 = vsel %vm128, %v123, -inf
      %139 = vmax.xlane.f32.xlu0 %v138
      %v140 = vpop.xlane.xlu0 %139
      %v141 = vsel %vm128, %v124, -inf
      %142 = vmax.xlane.f32.xlu0 %v141
      %v143 = vpop.xlane.xlu0 %142
      %v144 = vsel %vm128, %v125, -inf
      %145 = vmax.xlane.f32.xlu0 %v144
      %v146 = vpop.xlane.xlu0 %145
      %v147 = vsel %vm128, %v126, -inf
      %148 = vmax.xlane.f32.xlu0 %v147
      %v149 = vpop.xlane.xlu0 %148
      %v150 = vsel %vm128, %v127, -inf
      %151 = vmax.xlane.f32.xlu0 %v150
      %v152 = vpop.xlane.xlu0 %151
      %v153 = vsub.f32 %v120, %v131
      %v154 = vsub.f32 %v121, %v134
      %v155 = vsub.f32 %v122, %v137
      %v156 = vsub.f32 %v123, %v140
      %v157 = vsub.f32 %v124, %v143
      %v158 = vsub.f32 %v125, %v146
      %v159 = vsub.f32 %v126, %v149
      %v160 = vsub.f32 %v127, %v152
      %v161 = vmul.f32 %v153, 1.442695
      %v162 = vpow.pop %v161
      %v163 = vmul.f32 %v154, 1.442695
      %v164 = vpow.pop %v163
      %v165 = vmul.f32 %v155, 1.442695
      %v166 = vpow.pop %v165
      %v167 = vmul.f32 %v156, 1.442695
      %v168 = vpow.pop %v167
      %v169 = vmul.f32 %v157, 1.442695
      %v170 = vpow.pop %v169
      %v171 = vmul.f32 %v158, 1.442695
      %v172 = vpow.pop %v171
      %v173 = vmul.f32 %v159, 1.442695
      %v174 = vpow.pop %v173
      %v175 = vmul.f32 %v160, 1.442695
      %v176 = vpow.pop %v175
      %v177 = vsel %vm128, %v162, 0.0
      %178 = vadd.xlane.f32.xlu0 %v177
      %v179 = vpop.xlane.xlu0 %178
      %v180 = vsel %vm128, %v164, 0.0
      %181 = vadd.xlane.f32.xlu0 %v180
      %v182 = vpop.xlane.xlu0 %181
      %v183 = vsel %vm128, %v166, 0.0
      %184 = vadd.xlane.f32.xlu0 %v183
      %v185 = vpop.xlane.xlu0 %184
      %v186 = vsel %vm128, %v168, 0.0
      %187 = vadd.xlane.f32.xlu0 %v186
      %v188 = vpop.xlane.xlu0 %187
      %v189 = vsel %vm128, %v170, 0.0
      %190 = vadd.xlane.f32.xlu0 %v189
      %v191 = vpop.xlane.xlu0 %190
      %v192 = vsel %vm128, %v172, 0.0
      %193 = vadd.xlane.f32.xlu0 %v192
      %v194 = vpop.xlane.xlu0 %193
      %v195 = vsel %vm128, %v174, 0.0
      %196 = vadd.xlane.f32.xlu0 %v195
      %v197 = vpop.xlane.xlu0 %196
      %v198 = vsel %vm128, %v176, 0.0
      %199 = vadd.xlane.f32.xlu0 %v198
      %v200 = vpop.xlane.xlu0 %199
      %v201 = vrcp.pop %v179
      %v202 = vmul.f32 %v162, %v201
      %v203 = vrcp.pop %v182
      %v204 = vmul.f32 %v164, %v203
      %v205 = vrcp.pop %v185
      %v206 = vmul.f32 %v166, %v205
      %v207 = vrcp.pop %v188
      %v208 = vmul.f32 %v168, %v207
      %v209 = vrcp.pop %v191
      %v210 = vmul.f32 %v170, %v209
      %v211 = vrcp.pop %v194
      %v212 = vmul.f32 %v172, %v211
      %v213 = vrcp.pop %v197
      %v214 = vmul.f32 %v174, %v213
      %v215 = vrcp.pop %v200
      %v216 = vmul.f32 %v176, %v215
      %217 = vst.msk [vmem:[%s118] sm:$0xff] %vm128, %v202
      %218 = vst.msk [vmem:[%s118 + $0x8] sm:$0xff] %vm128, %v204
      %219 = vst.msk [vmem:[%s118 + $0x10] sm:$0xff] %vm128, %v206
      %220 = vst.msk [vmem:[%s118 + $0x18] sm:$0xff] %vm128, %v208
      %221 = vst.msk [vmem:[%s118 + $0x20] sm:$0xff] %vm128, %v210
      %222 = vst.msk [vmem:[%s118 + $0x28] sm:$0xff] %vm128, %v212
      %223 = vst.msk [vmem:[%s118 + $0x30] sm:$0xff] %vm128, %v214
      %224 = vst.msk [vmem:[%s118 + $0x38] sm:$0xff] %vm128, %v216
      %s225 = smul.u32 8, %s12
      %p226 = scmp.lt.s32.totalorder %s225, 15
      %s227 = scalar_select %p226, %s225, 15
      %s228 = smul.addr %s227, 8
      %s229 = scalar_lea.vmem %s1, %s228
      // Predicated region
      $region25: #{_softmax_lastdim_2d.1} parent=23 // pred_check
        %p230 = pneg %p56
      $region26: #{_softmax_lastdim_2d.1} parent=23 // pred_check_branch
        %232 = sbr.rel (%p230) target = $region28
      $region27: #{_softmax_lastdim_2d.1} parent=23 // pred_region
        %s233 = smul.u32 8, %s12
      $region28: #{_softmax_lastdim_2d.1} parent=23 // pred_fallthru
        _
    $region24: #{_softmax_lastdim_2d.1} parent=5 // pred_fallthru
      _
    %p234 = scmp.le.s32.totalorder 2, %s7
    // Predicated region
    $region29: #{_softmax_lastdim_2d.1} parent=5 // pred_check
      %p235 = pneg %p234
    $region30: #{_softmax_lastdim_2d.1} parent=5 // pred_check_branch
      %237 = sbr.rel (%p235) target = $region32
    $region31: #{_softmax_lastdim_2d.1} parent=5 // pred_region
      %s238 = ssub.s32 %s7, 2
      // Predicated region
      $region33: #{_softmax_lastdim_2d.1} parent=31 // pred_check
        %p239 = pneg %p62
      $region34: #{_softmax_lastdim_2d.1} parent=31 // pred_check_branch
        %241 = sbr.rel (%p239) target = $region36
      $region35: #{_softmax_lastdim_2d.1} parent=31 // pred_region
        %s242 = smul.u32 8, %s13
        %p243 = scmp.lt.s32.totalorder %s242, 15
        %s244 = scalar_select %p243, %s242, 15
        %s245 = smul.addr %s244, 8
        %s246 = scalar_lea.vmem %s1, %s245
      $region36: #{_softmax_lastdim_2d.1} parent=31 // pred_fallthru
        _
    $region32: #{_softmax_lastdim_2d.1} parent=5 // pred_fallthru
      _
  $region6: #{_softmax_lastdim_2d.1} parent=0 // loop_footer
    %s11 = sadd.s32 1, %s7
  $region7: #{_softmax_lastdim_2d.1} parent=0 // loop_footer_branch
    %6 = sbr.rel target = $region3
  $region8: #{_softmax_lastdim_2d.1} parent=0 // loop_exit
    _

</llo_original>
